<compile_context>
chip_gen: v6e
topology: v6e:2x2x1
jax: 0.10.0
libtpu: 0.0.40
codegen_flags: <defaults>
</compile_context>

<pallas_src>
import numpy as np
import jax
import jax.numpy as jnp
from jax.experimental import pallas as pl
from jax.experimental.pallas import tpu as pltpu


def _bilinear_matrix(out_size, in_size):
    """1-D interpolation matrix matching F.interpolate(mode='bilinear',
    align_corners=False, antialias=False) along a single axis: y = M @ x."""
    M = np.zeros((out_size, in_size), dtype=np.float32)
    scale = in_size / out_size
    for d in range(out_size):
        src = (d + 0.5) * scale - 0.5
        src = max(src, 0.0)
        i0 = min(int(np.floor(src)), in_size - 1)
        i1 = min(i0 + 1, in_size - 1)
        t = src - i0
        M[d, i0] += 1.0 - t
        M[d, i1] += t
    return M


def _pick_row_block(B, C, target_rows=256):
    """(b, c) rows per grid block: a multiple of C (whole batch elements per
    block) dividing B*C, sublane-legal for both the input block (rows) and the
    output block (rows // C), and close to `target_rows` so the MXU M
    dimension is large while per-block VMEM stays small.  Prefers choices that
    give an even number of grid blocks so both v7x TensorCores get work
    (irrelevant on v5e/v6e)."""
    rows = B * C
    cands = [m for m in range(C, rows + 1, C)
             if rows % m == 0
             and (m % 8 == 0 or m == rows)             # input block sublanes
             and ((m // C) % 8 == 0 or m == rows)]     # output block sublanes
    if not cands:
        return rows
    fit = [m for m in cands if m <= target_rows] or [min(cands)]
    even = [m for m in fit if (rows // m) % 2 == 0]
    return max(even) if even else max(fit)


def _build_operators(C, H, W):
    """Dense flattened-spatial interpolation operators (mean scales folded in).

    With each image flattened row-major to H*W lanes:
      D  (H*W,  H2*W2): gd_flat   = g_flat  @ D    guidance 2x downsample
      Oh (H2*W2, H*W) : whup_flat = wh_flat @ Oh   weight_h upsample * 1/Nh
      Ow (H2*W2, H*W) : wwup_flat = ww_flat @ Ow   weight_w upsample * 1/Nw
    Oh's zero column i=H2-1 drops the lane-roll wrap row of wh and its zero
    rows a=H-1 zero whup at h=H-1; Ow's zero column j=W2-1 / zero rows b=W-1
    do the same for the w direction, so the roll-based diffs need no masks.
    """
    H2, W2 = H // 2, W // 2
    dh = _bilinear_matrix(H2, H)
    dw = _bilinear_matrix(W2, W)
    uhh = _bilinear_matrix(H - 1, H2 - 1)
    uhw = _bilinear_matrix(W, W2)
    uwh = _bilinear_matrix(H, H2)
    uww = _bilinear_matrix(W - 1, W2 - 1)

    inv_nh = 1.0 / float(C * (H - 1) * W)
    inv_nw = 1.0 / float(C * H * (W - 1))

    D = np.kron(dh, dw).T.astype(np.float32)                     # (H*W, H2*W2)

    uhh_pad = np.zeros((H, H2), np.float32)
    uhh_pad[:H - 1, :H2 - 1] = uhh
    Oh = (np.kron(uhh_pad, uhw).T * inv_nh).astype(np.float32)   # (H2*W2, H*W)

    uww_pad = np.zeros((W, W2), np.float32)
    uww_pad[:W - 1, :W2 - 1] = uww
    Ow = (np.kron(uwh, uww_pad).T * inv_nw).astype(np.float32)   # (H2*W2, H*W)

    return D, np.stack([Oh, Ow], axis=0)                         # (2, H2*W2, H*W)


def _make_btv_kernel(C, W, W2, b_blk):
    def kernel(d_ref, u_ref, g_ref, x_ref, o_ref):
        f32 = jnp.float32
        g = g_ref[...]                                            # (m_blk, H*W)
        x = x_ref[...]                                            # (m_blk, H*W)

        # Downsampled guidance at lane width H2*W2 = H*W/4.
        gd = jnp.dot(g, d_ref[...], preferred_element_type=f32)   # (m_blk, H2*W2)

        # --- h branch first: folded into the accumulator before the w branch
        #     is materialized (keeps peak live (m_blk, H*W) f32 tensors low).
        wh = jnp.exp(-jnp.abs(jnp.roll(gd, -W2, axis=-1) - gd))   # gd[i+1,j]-gd[i,j]
        wh_up = jnp.dot(wh, u_ref[0], preferred_element_type=f32) # 1/Nh folded in
        dxh = jnp.roll(x, -W, axis=-1) - x                        # x[h+1,w]-x[h,w]
        acc = (dxh * dxh) * wh_up

        # --- w branch ---
        ww = jnp.exp(-jnp.abs(jnp.roll(gd, -1, axis=-1) - gd))    # gd[i,j+1]-gd[i,j]
        ww_up = jnp.dot(ww, u_ref[1], preferred_element_type=f32) # 1/Nw folded in
        dxw = jnp.roll(x, -1, axis=-1) - x
        acc = acc + (dxw * dxw) * ww_up

        # Exact-f32 channel reduction per batch element -> lane-dense
        # (b_blk, H*W) partial sums.  The roll-wrap garbage rows/cols were
        # already annihilated by the structural zeros built into Oh / Ow.
        for b in range(b_blk):
            o_ref[b:b + 1, :] = jnp.sum(acc[b * C:(b + 1) * C, :],
                                        axis=0, keepdims=True)

    return kernel


def bilateral_total_variation(x, guidance, weight=0.1):
    B, C, H, W = x.shape
    if guidance.shape != x.shape:
        raise ValueError("x and guidance must have the same shape")
    if H % 2 or W % 2 or H < 4 or W < 4:
        # TODO(synk): odd H/W (floor-sized downsample) and antialias variants
        # of F.interpolate are not covered; only the module's default
        # even-spatial-size path is implemented.
        raise ValueError("H and W must be even and >= 4")

    H2, W2 = H // 2, W // 2
    HW, HW2 = H * W, H2 * W2
    rows = B * C
    m_blk = _pick_row_block(B, C)
    b_blk = m_blk // C
    nblk = rows // m_blk

    D, U = _build_operators(C, H, W)

    # Free reshapes (contiguous dims collapse) — no HBM transpose pass.
    x2 = x.reshape(rows, HW).astype(jnp.float32)
    g2 = guidance.reshape(rows, HW).astype(jnp.float32)

    kernel = _make_btv_kernel(C, W, W2, b_blk)

    col = pl.pallas_call(
        kernel,
        out_shape=jax.ShapeDtypeStruct((B, HW), jnp.float32),
        grid=(nblk,),
        in_specs=[
            pl.BlockSpec((HW, HW2), lambda i: (0, 0)),        # D  (constant)
            pl.BlockSpec((2, HW2, HW), lambda i: (0, 0, 0)),  # Oh/Ow (constant)
            pl.BlockSpec((m_blk, HW), lambda i: (i, 0)),      # guidance rows
            pl.BlockSpec((m_blk, HW), lambda i: (i, 0)),      # x rows
        ],
        out_specs=pl.BlockSpec((b_blk, HW), lambda i: (i, 0)),
        compiler_params=pltpu.CompilerParams(
            dimension_semantics=("parallel",)),
    )(jnp.asarray(D), jnp.asarray(U), g2, x2)

    # Tiny per-batch finish + broadcast add stay in XLA.
    btv = jnp.sum(col, axis=1)                                    # (B,)
    return x + weight * btv.astype(x.dtype)[:, None, None, None]


def _reference(x, guidance, weight=0.1):
    """Pure-JAX reference mirroring the PyTorch module (same bilinear maps)."""
    B, C, H, W = x.shape
    H2, W2 = H // 2, W // 2
    dh = jnp.asarray(_bilinear_matrix(H2, H))
    dw = jnp.asarray(_bilinear_matrix(W2, W))
    uhh = jnp.asarray(_bilinear_matrix(H - 1, H2 - 1))
    uhw = jnp.asarray(_bilinear_matrix(W, W2))
    uwh = jnp.asarray(_bilinear_matrix(H, H2))
    uww = jnp.asarray(_bilinear_matrix(W - 1, W2 - 1))
    gd = jnp.einsum('ij,bcjk,lk->bcil', dh, guidance, dw)
    wh = jnp.exp(-jnp.abs(gd[:, :, 1:, :] - gd[:, :, :-1, :]))
    ww = jnp.exp(-jnp.abs(gd[:, :, :, 1:] - gd[:, :, :, :-1]))
    wh_up = jnp.einsum('ij,bcjk,lk->bcil', uhh, wh, uhw)
    ww_up = jnp.einsum('ij,bcjk,lk->bcil', uwh, ww, uww)
    dxh = x[:, :, 1:, :] - x[:, :, :-1, :]
    dxw = x[:, :, :, 1:] - x[:, :, :, :-1]
    btv = (dxh ** 2 * wh_up).mean(axis=(1, 2, 3), keepdims=True) + \
          (dxw ** 2 * ww_up).mean(axis=(1, 2, 3), keepdims=True)
    return x + weight * btv


if __name__ == "__main__":
    key = jax.random.PRNGKey(0)
    kx, kg = jax.random.split(key)
    B, C, H, W = 2, 4, 16, 16
    x = jax.random.normal(kx, (B, C, H, W), dtype=jnp.float32)
    guidance = jax.random.normal(kg, (B, C, H, W), dtype=jnp.float32)

    out = jax.block_until_ready(bilateral_total_variation(x, guidance, weight=0.1))
    ref = jax.block_until_ready(_reference(x, guidance, weight=0.1))

    if not np.allclose(np.asarray(out), np.asarray(ref), rtol=2e-5, atol=2e-5):
        max_err = float(np.max(np.abs(np.asarray(out) - np.asarray(ref))))
        raise AssertionError(
            f"Pallas kernel does not match reference (max_err={max_err})")

    print("KERNEL_OK")
</pallas_src>

<mosaic_0001>
module attributes {stable_mosaic.version = 11 : i64} {
  func.func @kernel(%arg0: i32, %arg1: memref<256x64xf32, #tpu.memory_space<vmem>>, %arg2: memref<2x64x256xf32, #tpu.memory_space<vmem>>, %arg3: memref<8x256xf32, #tpu.memory_space<vmem>>, %arg4: memref<8x256xf32, #tpu.memory_space<vmem>>, %arg5: memref<2x256xf32, #tpu.memory_space<vmem>>) attributes {dimension_semantics = [#tpu.dimension_semantics<parallel>], iteration_bounds = array<i64: 1>, scalar_prefetch = 0 : i64, scratch_operands = 0 : i64, tpu.core_type = #tpu.core_type<tc>, window_params = [{pipeline_mode = #tpu.pipeline_mode<synchronous>, transform_indices = @transform_0, window_bounds = array<i64: 256, 64>}, {pipeline_mode = #tpu.pipeline_mode<synchronous>, transform_indices = @transform_1, window_bounds = array<i64: 2, 64, 256>}, {transform_indices = @transform_2, window_bounds = array<i64: 8, 256>}, {transform_indices = @transform_3, window_bounds = array<i64: 8, 256>}, {transform_indices = @transform_4, window_bounds = array<i64: 2, 256>}]} {
    %c0 = arith.constant 0 : index
    %c0_0 = arith.constant 0 : index
    %0 = vector.load %arg3[%c0, %c0_0] : memref<8x256xf32, #tpu.memory_space<vmem>>, vector<8x256xf32>
    %c0_1 = arith.constant 0 : index
    %c0_2 = arith.constant 0 : index
    %1 = vector.load %arg4[%c0_1, %c0_2] : memref<8x256xf32, #tpu.memory_space<vmem>>, vector<8x256xf32>
    %c0_3 = arith.constant 0 : index
    %c0_4 = arith.constant 0 : index
    %2 = vector.load %arg1[%c0_3, %c0_4] : memref<256x64xf32, #tpu.memory_space<vmem>>, vector<256x64xf32>
    %cst = arith.constant dense<0.000000e+00> : vector<8x64xf32>
    %3 = tpu.matmul %0, %2, %cst {dimension_numbers = #tpu.dot_dimension_numbers<[1], [0], [0], [1], [0, 0, 1, 1], [], []>} : vector<8x256xf32>, vector<256x64xf32>, vector<8x64xf32> -> vector<8x64xf32>
    %4 = vector.extract_strided_slice %3 {offsets = [0, 8], sizes = [8, 56], strides = [1, 1]} : vector<8x64xf32> to vector<8x56xf32>
    %5 = vector.extract_strided_slice %3 {offsets = [0, 0], sizes = [8, 8], strides = [1, 1]} : vector<8x64xf32> to vector<8x8xf32>
    %6 = tpu.concatenate %4, %5 in 1 : vector<8x56xf32>, vector<8x8xf32> -> vector<8x64xf32>
    %7 = arith.subf %6, %3 : vector<8x64xf32>
    %8 = math.absf %7 : vector<8x64xf32>
    %cst_5 = arith.constant 0.000000e+00 : f32
    %9 = vector.broadcast %cst_5 : f32 to vector<8x64xf32>
    %10 = arith.subf %9, %8 : vector<8x64xf32>
    %11 = math.exp %10 : vector<8x64xf32>
    %c0_6 = arith.constant 0 : index
    %c0_7 = arith.constant 0 : index
    %c0_8 = arith.constant 0 : index
    %12 = vector.load %arg2[%c0_6, %c0_7, %c0_8] : memref<2x64x256xf32, #tpu.memory_space<vmem>>, vector<1x64x256xf32>
    %13 = vector.shape_cast %12 : vector<1x64x256xf32> to vector<64x256xf32>
    %cst_9 = arith.constant dense<0.000000e+00> : vector<8x256xf32>
    %14 = tpu.matmul %11, %13, %cst_9 {dimension_numbers = #tpu.dot_dimension_numbers<[1], [0], [0], [1], [0, 0, 1, 1], [], []>} : vector<8x64xf32>, vector<64x256xf32>, vector<8x256xf32> -> vector<8x256xf32>
    %15 = vector.extract_strided_slice %1 {offsets = [0, 16], sizes = [8, 240], strides = [1, 1]} : vector<8x256xf32> to vector<8x240xf32>
    %16 = vector.extract_strided_slice %1 {offsets = [0, 0], sizes = [8, 16], strides = [1, 1]} : vector<8x256xf32> to vector<8x16xf32>
    %17 = tpu.concatenate %15, %16 in 1 : vector<8x240xf32>, vector<8x16xf32> -> vector<8x256xf32>
    %18 = arith.subf %17, %1 : vector<8x256xf32>
    %19 = arith.mulf %18, %18 : vector<8x256xf32>
    %20 = arith.mulf %19, %14 : vector<8x256xf32>
    %21 = vector.extract_strided_slice %3 {offsets = [0, 1], sizes = [8, 63], strides = [1, 1]} : vector<8x64xf32> to vector<8x63xf32>
    %22 = vector.extract_strided_slice %3 {offsets = [0, 0], sizes = [8, 1], strides = [1, 1]} : vector<8x64xf32> to vector<8x1xf32>
    %23 = tpu.concatenate %21, %22 in 1 : vector<8x63xf32>, vector<8x1xf32> -> vector<8x64xf32>
    %24 = arith.subf %23, %3 : vector<8x64xf32>
    %25 = math.absf %24 : vector<8x64xf32>
    %cst_10 = arith.constant 0.000000e+00 : f32
    %26 = vector.broadcast %cst_10 : f32 to vector<8x64xf32>
    %27 = arith.subf %26, %25 : vector<8x64xf32>
    %28 = math.exp %27 : vector<8x64xf32>
    %c1 = arith.constant 1 : index
    %c0_11 = arith.constant 0 : index
    %c0_12 = arith.constant 0 : index
    %29 = vector.load %arg2[%c1, %c0_11, %c0_12] : memref<2x64x256xf32, #tpu.memory_space<vmem>>, vector<1x64x256xf32>
    %30 = vector.shape_cast %29 : vector<1x64x256xf32> to vector<64x256xf32>
    %cst_13 = arith.constant dense<0.000000e+00> : vector<8x256xf32>
    %31 = tpu.matmul %28, %30, %cst_13 {dimension_numbers = #tpu.dot_dimension_numbers<[1], [0], [0], [1], [0, 0, 1, 1], [], []>} : vector<8x64xf32>, vector<64x256xf32>, vector<8x256xf32> -> vector<8x256xf32>
    %32 = vector.extract_strided_slice %1 {offsets = [0, 1], sizes = [8, 255], strides = [1, 1]} : vector<8x256xf32> to vector<8x255xf32>
    %33 = vector.extract_strided_slice %1 {offsets = [0, 0], sizes = [8, 1], strides = [1, 1]} : vector<8x256xf32> to vector<8x1xf32>
    %34 = tpu.concatenate %32, %33 in 1 : vector<8x255xf32>, vector<8x1xf32> -> vector<8x256xf32>
    %35 = arith.subf %34, %1 : vector<8x256xf32>
    %36 = arith.mulf %35, %35 : vector<8x256xf32>
    %37 = arith.mulf %36, %31 : vector<8x256xf32>
    %38 = arith.addf %20, %37 : vector<8x256xf32>
    %39 = vector.extract_strided_slice %38 {offsets = [0, 0], sizes = [4, 256], strides = [1, 1]} : vector<8x256xf32> to vector<4x256xf32>
    %cst_14 = arith.constant dense<0.000000e+00> : vector<256xf32>
    %40 = vector.multi_reduction <add>, %39, %cst_14 [0] : vector<4x256xf32> to vector<256xf32>
    %41 = vector.shape_cast %40 : vector<256xf32> to vector<1x256xf32>
    %c0_15 = arith.constant 0 : index
    %c0_16 = arith.constant 0 : index
    %42 = vector.load %arg5[%c0_15, %c0_16] : memref<2x256xf32, #tpu.memory_space<vmem>>, vector<1x256xf32>
    tpu.vector_store %arg5[%c0_15, %c0_16], %41 {strides = array<i32>} : memref<2x256xf32, #tpu.memory_space<vmem>>, vector<1x256xf32>,
    %43 = vector.extract_strided_slice %38 {offsets = [4, 0], sizes = [4, 256], strides = [1, 1]} : vector<8x256xf32> to vector<4x256xf32>
    %cst_17 = arith.constant dense<0.000000e+00> : vector<256xf32>
    %44 = vector.multi_reduction <add>, %43, %cst_17 [0] : vector<4x256xf32> to vector<256xf32>
    %45 = vector.shape_cast %44 : vector<256xf32> to vector<1x256xf32>
    %c1_18 = arith.constant 1 : index
    %c0_19 = arith.constant 0 : index
    %46 = vector.load %arg5[%c1_18, %c0_19] : memref<2x256xf32, #tpu.memory_space<vmem>>, vector<1x256xf32>
    tpu.vector_store %arg5[%c1_18, %c0_19], %45 {strides = array<i32>} : memref<2x256xf32, #tpu.memory_space<vmem>>, vector<1x256xf32>,
    return
  }
  func.func @transform_0(%arg0: i32) -> (i32, i32) {
    %c0_i32 = arith.constant 0 : i32
    %c0_i32_0 = arith.constant 0 : i32
    %c0_i32_1 = arith.constant 0 : i32
    return %c0_i32, %c0_i32_0 : i32, i32
  }
  func.func @transform_1(%arg0: i32) -> (i32, i32, i32) {
    %c0_i32 = arith.constant 0 : i32
    %c0_i32_0 = arith.constant 0 : i32
    %c0_i32_1 = arith.constant 0 : i32
    %c0_i32_2 = arith.constant 0 : i32
    return %c0_i32, %c0_i32_0, %c0_i32_1 : i32, i32, i32
  }
  func.func @transform_2(%arg0: i32) -> (i32, i32) {
    %c0_i32 = arith.constant 0 : i32
    %c0_i32_0 = arith.constant 0 : i32
    return %arg0, %c0_i32 : i32, i32
  }
  func.func @transform_3(%arg0: i32) -> (i32, i32) {
    %c0_i32 = arith.constant 0 : i32
    %c0_i32_0 = arith.constant 0 : i32
    return %arg0, %c0_i32 : i32, i32
  }
  func.func @transform_4(%arg0: i32) -> (i32, i32) {
    %c0_i32 = arith.constant 0 : i32
    %c0_i32_0 = arith.constant 0 : i32
    return %arg0, %c0_i32 : i32, i32
  }
}

</mosaic_0001>

<llo_original>
// kernel: tpu_custom_call.1
$region0: #{tpu_custom_call.1}
  #allocation0 [shape = 'u32[]', space=smem, size = 0x4, offset = 0x4, fixed_abs, tag = 'smem constant byte address 0x4 - core index']
  #allocation1 [shape = 'u32[144,128]{1,0:T(1,128)}', space=vmem, size = 0x12000, scoped, tag = 'internal scratch']
  %s0 = inlined_call_operand.vmem [shape: f32[256,64], index: 0, kind: input, shape index: {}]
  %s1 = inlined_call_operand.vmem [shape: f32[2,64,256], index: 1, kind: input, shape index: {}]
  %s2 = inlined_call_operand.vmem [shape: f32[8,256], index: 2, kind: input, shape index: {}]
  %s3 = inlined_call_operand.vmem [shape: f32[8,256], index: 3, kind: input, shape index: {}]
  %s4 = inlined_call_operand.hbm [shape: f32[2,256], index: 4, kind: output, shape index: {}]
  %s5 = sld [smem:[#allocation0]]
  $region26: #{tpu_custom_call.1} parent=0
    _
  %s7 = ssub.s32 1, %s5
  %s8 = scalar_select 0, %s7, %s5
  $region1: #{tpu_custom_call.1} parent=0
    #allocation2 [shape = 'u8[2048]{0}', space=vmem, size = 0x800, scoped, tag = 'output window, operand 0, single buffered']
    #allocation3 [shape = 's32[1]{0}', space=sflag, size = 0x4, scoped, tag = 'scoped memory for tpu_custom_call.1']
    %9 = vsyncpa [#allocation3], 0
    // Predicated region
    $region2: #{tpu_custom_call.1} parent=1 // pred_check
      _
    $region3: #{tpu_custom_call.1} parent=1 // pred_check_branch
      %11 = sbr.rel (0) target = $region5
    $region4: #{tpu_custom_call.1} parent=1 // pred_region
      _
    $region5: #{tpu_custom_call.1} parent=1 // pred_fallthru
      _
    // Predicated region
    $region6: #{tpu_custom_call.1} parent=1 // pred_check
      _
    $region7: #{tpu_custom_call.1} parent=1 // pred_check_branch
      %13 = sbr.rel (0) target = $region9
    $region8: #{tpu_custom_call.1} parent=1 // pred_region
      _
    $region9: #{tpu_custom_call.1} parent=1 // pred_fallthru
      _
    // Predicated region
    $region10: #{tpu_custom_call.1} parent=1 // pred_check
      _
    $region11: #{tpu_custom_call.1} parent=1 // pred_check_branch
      %15 = sbr.rel (0) target = $region13
    $region12: #{tpu_custom_call.1} parent=1 // pred_region
      _
    $region13: #{tpu_custom_call.1} parent=1 // pred_fallthru
      _
    // Predicated region
    $region14: #{tpu_custom_call.1} parent=1 // pred_check
      _
    $region15: #{tpu_custom_call.1} parent=1 // pred_check_branch
      %17 = sbr.rel (0) target = $region17
    $region16: #{tpu_custom_call.1} parent=1 // pred_region
      _
    $region17: #{tpu_custom_call.1} parent=1 // pred_fallthru
      _
    %v18 = vld [vmem:[%s2] sm:$0xff]
    %v19 = vld [vmem:[%s2 + $0x8] sm:$0xff]
    %v20 = vld [vmem:[%s3] sm:$0xff]
    %v21 = vld [vmem:[%s3 + $0x8] sm:$0xff]
    %v22 = vld [vmem:[%s0] sm:$0xff]
    %v23 = vld [vmem:[%s0 + $0x8] sm:$0xff]
    %v24 = vld [vmem:[%s0 + $0x10] sm:$0xff]
    %v25 = vld [vmem:[%s0 + $0x18] sm:$0xff]
    %v26 = vld [vmem:[%s0 + $0x20] sm:$0xff]
    %v27 = vld [vmem:[%s0 + $0x28] sm:$0xff]
    %v28 = vld [vmem:[%s0 + $0x30] sm:$0xff]
    %v29 = vld [vmem:[%s0 + $0x38] sm:$0xff]
    %v30 = vld [vmem:[%s0 + $0x40] sm:$0xff]
    %v31 = vld [vmem:[%s0 + $0x48] sm:$0xff]
    %v32 = vld [vmem:[%s0 + $0x50] sm:$0xff]
    %v33 = vld [vmem:[%s0 + $0x58] sm:$0xff]
    %v34 = vld [vmem:[%s0 + $0x60] sm:$0xff]
    %v35 = vld [vmem:[%s0 + $0x68] sm:$0xff]
    %v36 = vld [vmem:[%s0 + $0x70] sm:$0xff]
    %v37 = vld [vmem:[%s0 + $0x78] sm:$0xff]
    %v38 = vld [vmem:[%s0 + $0x80] sm:$0xff]
    %v39 = vld [vmem:[%s0 + $0x88] sm:$0xff]
    %v40 = vld [vmem:[%s0 + $0x90] sm:$0xff]
    %v41 = vld [vmem:[%s0 + $0x98] sm:$0xff]
    %v42 = vld [vmem:[%s0 + $0xa0] sm:$0xff]
    %v43 = vld [vmem:[%s0 + $0xa8] sm:$0xff]
    %v44 = vld [vmem:[%s0 + $0xb0] sm:$0xff]
    %v45 = vld [vmem:[%s0 + $0xb8] sm:$0xff]
    %v46 = vld [vmem:[%s0 + $0xc0] sm:$0xff]
    %v47 = vld [vmem:[%s0 + $0xc8] sm:$0xff]
    %v48 = vld [vmem:[%s0 + $0xd0] sm:$0xff]
    %v49 = vld [vmem:[%s0 + $0xd8] sm:$0xff]
    %v50 = vld [vmem:[%s0 + $0xe0] sm:$0xff]
    %v51 = vld [vmem:[%s0 + $0xe8] sm:$0xff]
    %v52 = vld [vmem:[%s0 + $0xf0] sm:$0xff]
    %v53 = vld [vmem:[%s0 + $0xf8] sm:$0xff]
    %54 = vmatprep.subr.mxu0 0.0
    %55 = vmatpush1.msra.mxu0 %v37
    %56 = vmatprep.subr.mxu0 0.0
    %57 = vmatpush1.msra.mxu0 %v36
    %58 = vmatprep.subr.mxu0 0.0
    %59 = vmatpush1.msra.mxu0 %v35
    %60 = vmatprep.subr.mxu0 0.0
    %61 = vmatpush1.msra.mxu0 %v34
    %62 = vmatprep.subr.mxu0 0.0
    %63 = vmatpush1.msra.mxu0 %v33
    %64 = vmatprep.subr.mxu0 0.0
    %65 = vmatpush1.msra.mxu0 %v32
    %66 = vmatprep.subr.mxu0 0.0
    %67 = vmatpush1.msra.mxu0 %v31
    %68 = vmatprep.subr.mxu0 0.0
    %69 = vmatpush1.msra.mxu0 %v30
    %70 = vmatprep.subr.mxu0 0.0
    %71 = vmatpush1.msra.mxu0 %v29
    %72 = vmatprep.subr.mxu0 0.0
    %73 = vmatpush1.msra.mxu0 %v28
    %74 = vmatprep.subr.mxu0 0.0
    %75 = vmatpush1.msra.mxu0 %v27
    %76 = vmatprep.subr.mxu0 0.0
    %77 = vmatpush1.msra.mxu0 %v26
    %78 = vmatprep.subr.mxu0 0.0
    %79 = vmatpush1.msra.mxu0 %v25
    %80 = vmatprep.subr.mxu0 0.0
    %81 = vmatpush1.msra.mxu0 %v24
    %82 = vmatprep.subr.mxu0 0.0
    %83 = vmatpush1.msra.mxu0 %v23
    %84 = vmatprep.subr.mxu0 0.0
    %85 = vmatpush1.msra.mxu0 %v22
    %86 = vmatprep.subr.mxu0 0.0
    %87 = vmatpush2.msra.mxu0 %v53
    %88 = vmatprep.subr.mxu0 0.0
    %89 = vmatpush2.msra.mxu0 %v52
    %90 = vmatprep.subr.mxu0 0.0
    %91 = vmatpush2.msra.mxu0 %v51
    %92 = vmatprep.subr.mxu0 0.0
    %93 = vmatpush2.msra.mxu0 %v50
    %94 = vmatprep.subr.mxu0 0.0
    %95 = vmatpush2.msra.mxu0 %v49
    %96 = vmatprep.subr.mxu0 0.0
    %97 = vmatpush2.msra.mxu0 %v48
    %98 = vmatprep.subr.mxu0 0.0
    %99 = vmatpush2.msra.mxu0 %v47
    %100 = vmatprep.subr.mxu0 0.0
    %101 = vmatpush2.msra.mxu0 %v46
    %102 = vmatprep.subr.mxu0 0.0
    %103 = vmatpush2.msra.mxu0 %v45
    %104 = vmatprep.subr.mxu0 0.0
    %105 = vmatpush2.msra.mxu0 %v44
    %106 = vmatprep.subr.mxu0 0.0
    %107 = vmatpush2.msra.mxu0 %v43
    %108 = vmatprep.subr.mxu0 0.0
    %109 = vmatpush2.msra.mxu0 %v42
    %110 = vmatprep.subr.mxu0 0.0
    %111 = vmatpush2.msra.mxu0 %v41
    %112 = vmatprep.subr.mxu0 0.0
    %113 = vmatpush2.msra.mxu0 %v40
    %114 = vmatprep.subr.mxu0 0.0
    %115 = vmatpush2.msra.mxu0 %v39
    %116 = vmatprep.subr.mxu0 0.0
    %117 = vmatpush2.msra.mxu0 %v38
    %118 = vmatprep.mubr.f32.mxu0 %v19
    %119 = vmatmul.mubr.f32.gmra.mxu0 %v18
    %v120 = vpop.f32.mrf.mxu0
    %v121 = vadd.f32 0.0, %v120
    %v122 = vpop.f32.mrf.mxu0
    %123 = vdwg.mxu0
    %125 = vrot.lane.b32.xlu0 %v121, 120
    %v126 = vpop.permute.xlu0 %125
    %128 = vrot.lane.b32.xlu0 %v121, 56
    %v129 = vpop.permute.xlu0 %128
    %vm131 = vcmask 457728
    %v132 = vsel %vm131, %v126, %v129
    %v133 = vsub.f32 %v132, %v121
    %v134 = vand.u32 2147483647, %v133
    %v135 = vsub.f32 0.0, %v134
    %v136 = vmul.f32 %v135, 1.442695
    %v137 = vpow.pop %v136
    %v138 = vld [vmem:[%s1] sm:$0xff]
    %v139 = vld [vmem:[%s1 + $0x8] sm:$0xff]
    %v140 = vld [vmem:[%s1 + $0x10] sm:$0xff]
    %v141 = vld [vmem:[%s1 + $0x18] sm:$0xff]
    %v142 = vld [vmem:[%s1 + $0x20] sm:$0xff]
    %v143 = vld [vmem:[%s1 + $0x28] sm:$0xff]
    %v144 = vld [vmem:[%s1 + $0x30] sm:$0xff]
    %v145 = vld [vmem:[%s1 + $0x38] sm:$0xff]
    %v146 = vld [vmem:[%s1 + $0x40] sm:$0xff]
    %v147 = vld [vmem:[%s1 + $0x48] sm:$0xff]
    %v148 = vld [vmem:[%s1 + $0x50] sm:$0xff]
    %v149 = vld [vmem:[%s1 + $0x58] sm:$0xff]
    %v150 = vld [vmem:[%s1 + $0x60] sm:$0xff]
    %v151 = vld [vmem:[%s1 + $0x68] sm:$0xff]
    %v152 = vld [vmem:[%s1 + $0x70] sm:$0xff]
    %v153 = vld [vmem:[%s1 + $0x78] sm:$0xff]
    %vm154 = vcmask 523264
    %v156 = vsel %vm154, %v137, 0
    %158 = vmatprep.subr.mxu0 0.0
    %159 = vmatpush1.msra.mxu0 0.0
    %160 = vmatprep.subr.mxu0 0.0
    %161 = vmatpush1.msra.mxu0 0.0
    %162 = vmatprep.subr.mxu0 0.0
    %163 = vmatpush1.msra.mxu0 0.0
    %164 = vmatprep.subr.mxu0 0.0
    %165 = vmatpush1.msra.mxu0 0.0
    %166 = vmatprep.subr.mxu0 0.0
    %167 = vmatpush1.msra.mxu0 0.0
    %168 = vmatprep.subr.mxu0 0.0
    %169 = vmatpush1.msra.mxu0 0.0
    %170 = vmatprep.subr.mxu0 0.0
    %171 = vmatpush1.msra.mxu0 0.0
    %172 = vmatprep.subr.mxu0 0.0
    %173 = vmatpush1.msra.mxu0 0.0
    %174 = vmatprep.subr.mxu0 %v153
    %175 = vmatpush1.msra.mxu0 %v152
    %176 = vmatprep.subr.mxu0 %v151
    %177 = vmatpush1.msra.mxu0 %v150
    %178 = vmatprep.subr.mxu0 %v149
    %179 = vmatpush1.msra.mxu0 %v148
    %180 = vmatprep.subr.mxu0 %v147
    %181 = vmatpush1.msra.mxu0 %v146
    %182 = vmatprep.subr.mxu0 %v145
    %183 = vmatpush1.msra.mxu0 %v144
    %184 = vmatprep.subr.mxu0 %v143
    %185 = vmatpush1.msra.mxu0 %v142
    %186 = vmatprep.subr.mxu0 %v141
    %187 = vmatpush1.msra.mxu0 %v140
    %188 = vmatprep.subr.mxu0 %v139
    %189 = vmatpush1.msra.mxu0 %v138
    %190 = vmatprep.subr.mxu0 0.0
    %191 = vmatpush2.msra.mxu0 0.0
    %192 = vmatprep.subr.mxu0 0.0
    %193 = vmatpush2.msra.mxu0 0.0
    %194 = vmatprep.subr.mxu0 0.0
    %195 = vmatpush2.msra.mxu0 0.0
    %196 = vmatprep.subr.mxu0 0.0
    %197 = vmatpush2.msra.mxu0 0.0
    %198 = vmatprep.subr.mxu0 0.0
    %199 = vmatpush2.msra.mxu0 0.0
    %200 = vmatprep.subr.mxu0 0.0
    %201 = vmatpush2.msra.mxu0 0.0
    %202 = vmatprep.subr.mxu0 0.0
    %203 = vmatpush2.msra.mxu0 0.0
    %204 = vmatprep.subr.mxu0 0.0
    %205 = vmatpush2.msra.mxu0 0.0
    %206 = vmatprep.subr.mxu0 0.0
    %207 = vmatpush2.msra.mxu0 0.0
    %208 = vmatprep.subr.mxu0 0.0
    %209 = vmatpush2.msra.mxu0 0.0
    %210 = vmatprep.subr.mxu0 0.0
    %211 = vmatpush2.msra.mxu0 0.0
    %212 = vmatprep.subr.mxu0 0.0
    %213 = vmatpush2.msra.mxu0 0.0
    %214 = vmatprep.subr.mxu0 0.0
    %215 = vmatpush2.msra.mxu0 0.0
    %216 = vmatprep.subr.mxu0 0.0
    %217 = vmatpush2.msra.mxu0 0.0
    %218 = vmatprep.subr.mxu0 0.0
    %219 = vmatpush2.msra.mxu0 0.0
    %220 = vmatprep.subr.mxu0 0.0
    %221 = vmatpush2.msra.mxu0 0.0
    %222 = vmatprep.mubr.f32.mxu0 0.0
    %223 = vmatmul.mubr.f32.gmra.mxu0 %v156
    %v224 = vpop.f32.mrf.mxu0
    %v225 = vadd.f32 0.0, %v224
    %v226 = vpop.f32.mrf.mxu0
    %v227 = vadd.f32 0.0, %v226
    %228 = vdwg.mxu0
    %231 = vrot.lane.b32.xlu0 %v20, 112
    %v232 = vpop.permute.xlu0 %231
    %233 = vrot.lane.b32.xlu0 %v21, 112
    %v234 = vpop.permute.xlu0 %233
    %vm235 = vcmask 916480
    %v236 = vsel %vm235, %v232, %v234
    %v240 = vsel %vm235, %v234, %v232
    %v241 = vsub.f32 %v236, %v20
    %v242 = vsub.f32 %v240, %v21
    %v243 = vmul.f32 %v241, %v241
    %v244 = vmul.f32 %v242, %v242
    %v245 = vmul.f32 %v243, %v225
    %v246 = vmul.f32 %v244, %v227
    %247 = vrot.lane.b32.xlu0 %v121, 127
    %v248 = vpop.permute.xlu0 %247
    %250 = vrot.lane.b32.xlu0 %v121, 63
    %v251 = vpop.permute.xlu0 %250
    %vm253 = vcmask 515072
    %v254 = vsel %vm253, %v248, %v251
    %v255 = vsub.f32 %v254, %v121
    %v256 = vand.u32 2147483647, %v255
    %v257 = vsub.f32 0.0, %v256
    %v258 = vmul.f32 %v257, 1.442695
    %v259 = vpow.pop %v258
    %s260 = scalar_lea.vmem %s1, 128
    %v261 = vld [vmem:[%s260] sm:$0xff]
    %v262 = vld [vmem:[%s260 + $0x8] sm:$0xff]
    %v263 = vld [vmem:[%s260 + $0x10] sm:$0xff]
    %v264 = vld [vmem:[%s260 + $0x18] sm:$0xff]
    %v265 = vld [vmem:[%s260 + $0x20] sm:$0xff]
    %v266 = vld [vmem:[%s260 + $0x28] sm:$0xff]
    %v267 = vld [vmem:[%s260 + $0x30] sm:$0xff]
    %v268 = vld [vmem:[%s260 + $0x38] sm:$0xff]
    %v269 = vld [vmem:[%s260 + $0x40] sm:$0xff]
    %v270 = vld [vmem:[%s260 + $0x48] sm:$0xff]
    %v271 = vld [vmem:[%s260 + $0x50] sm:$0xff]
    %v272 = vld [vmem:[%s260 + $0x58] sm:$0xff]
    %v273 = vld [vmem:[%s260 + $0x60] sm:$0xff]
    %v274 = vld [vmem:[%s260 + $0x68] sm:$0xff]
    %v275 = vld [vmem:[%s260 + $0x70] sm:$0xff]
    %v276 = vld [vmem:[%s260 + $0x78] sm:$0xff]
    %v278 = vsel %vm154, %v259, 0
    %280 = vmatprep.subr.mxu0 0.0
    %281 = vmatpush1.msra.mxu0 0.0
    %282 = vmatprep.subr.mxu0 0.0
    %283 = vmatpush1.msra.mxu0 0.0
    %284 = vmatprep.subr.mxu0 0.0
    %285 = vmatpush1.msra.mxu0 0.0
    %286 = vmatprep.subr.mxu0 0.0
    %287 = vmatpush1.msra.mxu0 0.0
    %288 = vmatprep.subr.mxu0 0.0
    %289 = vmatpush1.msra.mxu0 0.0
    %290 = vmatprep.subr.mxu0 0.0
    %291 = vmatpush1.msra.mxu0 0.0
    %292 = vmatprep.subr.mxu0 0.0
    %293 = vmatpush1.msra.mxu0 0.0
    %294 = vmatprep.subr.mxu0 0.0
    %295 = vmatpush1.msra.mxu0 0.0
    %296 = vmatprep.subr.mxu0 %v276
    %297 = vmatpush1.msra.mxu0 %v275
    %298 = vmatprep.subr.mxu0 %v274
    %299 = vmatpush1.msra.mxu0 %v273
    %300 = vmatprep.subr.mxu0 %v272
    %301 = vmatpush1.msra.mxu0 %v271
    %302 = vmatprep.subr.mxu0 %v270
    %303 = vmatpush1.msra.mxu0 %v269
    %304 = vmatprep.subr.mxu0 %v268
    %305 = vmatpush1.msra.mxu0 %v267
    %306 = vmatprep.subr.mxu0 %v266
    %307 = vmatpush1.msra.mxu0 %v265
    %308 = vmatprep.subr.mxu0 %v264
    %309 = vmatpush1.msra.mxu0 %v263
    %310 = vmatprep.subr.mxu0 %v262
    %311 = vmatpush1.msra.mxu0 %v261
    %312 = vmatprep.subr.mxu0 0.0
    %313 = vmatpush2.msra.mxu0 0.0
    %314 = vmatprep.subr.mxu0 0.0
    %315 = vmatpush2.msra.mxu0 0.0
    %316 = vmatprep.subr.mxu0 0.0
    %317 = vmatpush2.msra.mxu0 0.0
    %318 = vmatprep.subr.mxu0 0.0
    %319 = vmatpush2.msra.mxu0 0.0
    %320 = vmatprep.subr.mxu0 0.0
    %321 = vmatpush2.msra.mxu0 0.0
    %322 = vmatprep.subr.mxu0 0.0
    %323 = vmatpush2.msra.mxu0 0.0
    %324 = vmatprep.subr.mxu0 0.0
    %325 = vmatpush2.msra.mxu0 0.0
    %326 = vmatprep.subr.mxu0 0.0
    %327 = vmatpush2.msra.mxu0 0.0
    %328 = vmatprep.subr.mxu0 0.0
    %329 = vmatpush2.msra.mxu0 0.0
    %330 = vmatprep.subr.mxu0 0.0
    %331 = vmatpush2.msra.mxu0 0.0
    %332 = vmatprep.subr.mxu0 0.0
    %333 = vmatpush2.msra.mxu0 0.0
    %334 = vmatprep.subr.mxu0 0.0
    %335 = vmatpush2.msra.mxu0 0.0
    %336 = vmatprep.subr.mxu0 0.0
    %337 = vmatpush2.msra.mxu0 0.0
    %338 = vmatprep.subr.mxu0 0.0
    %339 = vmatpush2.msra.mxu0 0.0
    %340 = vmatprep.subr.mxu0 0.0
    %341 = vmatpush2.msra.mxu0 0.0
    %342 = vmatprep.subr.mxu0 0.0
    %343 = vmatpush2.msra.mxu0 0.0
    %344 = vmatprep.mubr.f32.mxu0 0.0
    %345 = vmatmul.mubr.f32.gmra.mxu0 %v278
    %v346 = vpop.f32.mrf.mxu0
    %v347 = vadd.f32 0.0, %v346
    %v348 = vpop.f32.mrf.mxu0
    %v349 = vadd.f32 0.0, %v348
    %350 = vdwg.mxu0
    %351 = vrot.lane.b32.xlu0 %v20, 127
    %v352 = vpop.permute.xlu0 %351
    %353 = vrot.lane.b32.xlu0 %v21, 127
    %v354 = vpop.permute.xlu0 %353
    %vm355 = vcmask 1039360
    %v356 = vsel %vm355, %v352, %v354
    %v360 = vsel %vm355, %v354, %v352
    %v361 = vsub.f32 %v356, %v20
    %v362 = vsub.f32 %v360, %v21
    %v363 = vmul.f32 %v361, %v361
    %v364 = vmul.f32 %v362, %v362
    %v365 = vmul.f32 %v363, %v347
    %v366 = vmul.f32 %v364, %v349
    %v367 = vadd.f32 %v245, %v365
    %v368 = vadd.f32 %v246, %v366
    %vm369 = vcmask 1043456
    %v370 = vsel %vm369, %v367, 0.0
    %v371 = vrot.slane %v370, 4
    %v372 = vadd.f32 %v370, %v371
    %v373 = vrot.slane %v372, 2
    %v374 = vadd.f32 %v372, %v373
    %v375 = vrot.slane %v374, 1
    %v376 = vadd.f32 %v374, %v375
    %v377 = vsel %vm369, %v368, 0.0
    %v378 = vrot.slane %v377, 4
    %v379 = vadd.f32 %v377, %v378
    %v380 = vrot.slane %v379, 2
    %v381 = vadd.f32 %v379, %v380
    %v382 = vrot.slane %v381, 1
    %v383 = vadd.f32 %v381, %v382
    %v386 = vcombine.low %v376, %v383
    %v388 = vunpack.c.l.s4 1966171168
    %v389 = vunpack.c.0.s8 %v388
    %v390 = vlaneseq
    %v391 = vshrl.u32 %v390, 7
    %v392 = vsub.s32 %v389, %v391
    %v393 = vrot.slane %v386, %v392
    %v395 = vunpack.c.l.s4 1966171168
    %v396 = vunpack.c.0.s8 %v395
    %v397 = vlaneseq
    %v398 = vshrl.u32 %v397, 7
    %v399 = vsub.s32 %v396, %v398
    %v400 = vrot.slane %v393, %v399
    %v402 = vlaneseq
    %vm403 = vcmp.ge.s32.totalorder %v402, 0
    %vm404 = vcmp.lt.s32.totalorder %v402, 256
    %vm405 = vmand %vm403, %vm404
    %406 = vst.msk [vmem:[#allocation2] ss:$2 sm:$0x3] %vm405, %v400
    %v409 = vrot.slane %v367, 4
    %v410 = vrot.slane %v368, 4
    %v413 = vsel %vm369, %v409, 0.0
    %v414 = vrot.slane %v413, 4
    %v415 = vadd.f32 %v413, %v414
    %v416 = vrot.slane %v415, 2
    %v417 = vadd.f32 %v415, %v416
    %v418 = vrot.slane %v417, 1
    %v419 = vadd.f32 %v417, %v418
    %v420 = vsel %vm369, %v410, 0.0
    %v421 = vrot.slane %v420, 4
    %v422 = vadd.f32 %v420, %v421
    %v423 = vrot.slane %v422, 2
    %v424 = vadd.f32 %v422, %v423
    %v425 = vrot.slane %v424, 1
    %v426 = vadd.f32 %v424, %v425
    %v429 = vcombine.low %v419, %v426
    %v431 = vunpack.c.l.s4 1966171168
    %v432 = vunpack.c.0.s8 %v431
    %v433 = vlaneseq
    %v434 = vshrl.u32 %v433, 7
    %v435 = vsub.s32 %v432, %v434
    %v436 = vrot.slane %v429, %v435
    %v438 = vunpack.c.l.s4 1966171168
    %v439 = vunpack.c.0.s8 %v438
    %v440 = vlaneseq
    %v441 = vshrl.u32 %v440, 7
    %v442 = vsub.s32 %v439, %v441
    %v443 = vrot.slane %v436, %v442
    %s445 = scalar_lea.vmem [#allocation2], 1
    %446 = vst.msk [vmem:[%s445] ss:$2 sm:$0x3] %vm405, %v443
    // Predicated region
    $region18: #{tpu_custom_call.1} parent=1 // pred_check
      _
    $region19: #{tpu_custom_call.1} parent=1 // pred_check_branch
      %448 = sbr.rel (0) target = $region21
    $region20: #{tpu_custom_call.1} parent=1 // pred_region
      %s450 = ssub.s32 64, 64
      %451 = vsyncadd [#allocation3], %s450
      %s453 = sshll.u32 [#allocation2], 4
      %s454 = int_to_ptr.vmem [resolvable:$true] %s453
      %456 = dma.vmem_to_hbm [thread:$0]  %s454, 64, %s4, [#allocation3]
    $region21: #{tpu_custom_call.1} parent=1 // pred_fallthru
      _
    // Predicated region
    $region22: #{tpu_custom_call.1} parent=1 // pred_check
      _
    $region23: #{tpu_custom_call.1} parent=1 // pred_check_branch
      %458 = sbr.rel (0) target = $region25
    $region24: #{tpu_custom_call.1} parent=1 // pred_region
      %459 = dma.done [#allocation3], 64
    $region25: #{tpu_custom_call.1} parent=1 // pred_fallthru
      _
    %460 = vsyncpa [#allocation3], 1

</llo_original>
